<compile_context>
chip_gen: v7x
topology: tpu7x:2x2x1
jax: 0.10.0
libtpu: 0.0.40
codegen_flags: <defaults>
</compile_context>

<pallas_src>
import jax
import jax.numpy as jnp
from jax.experimental import pallas as pl
from jax.experimental.pallas import tpu as pltpu

_SUBLANE = 8  # f32 sublane quantum


def _make_resblock_kernel(H, W, C, NB, fuse_k):
    """C is the (padded) channel count, NB the images packed per grid step."""
    HW = H * W

    def lane_roll(v, shift):
        s = shift % HW            # normalize negative shifts; static Python int
        if s == 0:
            return v
        return pltpu.roll(v, s, axis=1)

    def kernel(x_ref, w1_ref, w2_ref, o_ref):
        # Halo-validity masks, built once per grid step from a lane iota at
        # full (C, HW) shape (no per-select implicit broadcasts), reused by
        # both convs and all NB images of this step.
        lane = jax.lax.broadcasted_iota(jnp.int32, (C, HW), 1)
        col = lane % W
        m_left = col >= 1           # tap reads column w-1 -> needs w >= 1
        m_right = col <= W - 2      # tap reads column w+1 -> needs w <= W-2
        m_up = lane >= W            # tap reads row h-1    -> needs h >= 1
        m_down = lane < HW - W      # tap reads row h+1    -> needs h <= H-2

        w1 = w1_ref[...]            # (C, 9C+1), last column is the bias
        w2 = w2_ref[...]
        ones_row = jnp.ones((1, HW), jnp.float32)

        def conv3x3(inp, w):
            # Horizontal taps: lane roll (XLU) + hoisted column masks (2 selects).
            h_m1 = jnp.where(m_left, lane_roll(inp, 1), 0.0)    # ow = -1
            h_p1 = jnp.where(m_right, lane_roll(inp, -1), 0.0)  # ow = +1
            h_taps = (h_m1, inp, h_p1)                          # ow = -1, 0, +1

            def tap(oh, ow):
                v = h_taps[ow + 1]
                if oh == -1:
                    return jnp.where(m_up, lane_roll(v, W), 0.0)
                if oh == 1:
                    return jnp.where(m_down, lane_roll(v, -W), 0.0)
                return v

            if fuse_k:
                # Small C: one fused K = 9C+1 contraction; bias folded in via
                # the ones row against the trailing bias column of w.
                stacked = jnp.concatenate(
                    [tap(oh, ow) for oh in (-1, 0, 1) for ow in (-1, 0, 1)]
                    + [ones_row], axis=0)                        # (9C+1, HW)
                return jnp.dot(w, stacked, preferred_element_type=jnp.float32)

            # Large C: consume each tap immediately with an accumulating
            # (C, C) @ (C, HW) dot -- never materializes the 9x im2col buffer.
            acc = jnp.broadcast_to(w[:, 9 * C:9 * C + 1], (C, HW)).astype(jnp.float32)
            t = 0
            for oh in (-1, 0, 1):
                for ow in (-1, 0, 1):
                    acc = acc + jnp.dot(w[:, t * C:(t + 1) * C], tap(oh, ow),
                                        preferred_element_type=jnp.float32)
                    t += 1
            return acc

        # Short static unroll over the images packed into this grid step
        # (amortizes the fixed per-step cost, enlarges the DMAs).
        for b in range(NB):
            x = x_ref[b].astype(jnp.float32)            # (C, HW)
            act = jnp.maximum(conv3x3(x, w1), 0.0)      # conv1 + bias + ReLU
            out = conv3x3(act, w2) + x                  # conv2 + bias + residual
            o_ref[b] = out.astype(o_ref.dtype)          # lane-dense store

    return kernel


def residual_block_pallas(x_nchw, w1, b1, w2, b2):
    """x_nchw: (N, C, H, W); w*: (C, C, 3, 3) effective (post weight-norm); b*: (C,)."""
    N, C, H, W = x_nchw.shape
    assert w1.shape == (C, C, 3, 3) and w2.shape == (C, C, 3, 3), \
        "ResidualBlock requires Cin == Cout"
    HW = H * W

    # Sublane-align the channel count; zero channels are exact (zero weights/bias).
    C_pad = max(_SUBLANE, ((C + _SUBLANE - 1) // _SUBLANE) * _SUBLANE)

    # Pack several images per grid step (target ~<= 1 MiB of activations/step).
    per_img_bytes = C_pad * HW * 4
    NB = int(max(1, min(N, (1 << 20) // per_img_bytes)))
    N_pad = ((N + NB - 1) // NB) * NB

    x2d = x_nchw.reshape(N, C, HW)
    if C_pad != C or N_pad != N:
        x2d = jnp.pad(x2d, ((0, N_pad - N), (0, C_pad - C), (0, 0)))

    def to_aug_matrix(w, b):
        # (Cout, Cin, 3, 3) -> (C_pad, 9*C_pad), tap-major / Cin-minor (matches
        # the stacked-tap row order in the kernel), plus the bias as a trailing
        # column contracted against an in-kernel ones row.
        wf = jnp.pad(w.astype(jnp.float32),
                     ((0, C_pad - C), (0, C_pad - C), (0, 0), (0, 0)))
        bf = jnp.pad(b.astype(jnp.float32), ((0, C_pad - C),))
        wm = jnp.transpose(wf, (0, 2, 3, 1)).reshape(C_pad, 9 * C_pad)
        return jnp.concatenate([wm, bf[:, None]], axis=1)   # (C_pad, 9*C_pad+1)

    w1_aug = to_aug_matrix(w1, b1)
    w2_aug = to_aug_matrix(w2, b2)

    # Fused K = 9C+1 dot while the stacked im2col tile stays small; per-tap
    # accumulating dots otherwise (big C => VMEM limiter, esp. on v7x).
    fuse_k = (9 * C_pad + 1) * HW * 4 <= (2 << 20)

    # TODO(synk): very large H*W would additionally need an HW-tile grid axis
    # (with halo exchange) to stay within v7x's 64 MiB VMEM.
    kernel = _make_resblock_kernel(H, W, C_pad, NB, fuse_k)

    out2d = pl.pallas_call(
        kernel,
        out_shape=jax.ShapeDtypeStruct((N_pad, C_pad, HW), x_nchw.dtype),
        grid_spec=pltpu.PrefetchScalarGridSpec(
            num_scalar_prefetch=0,
            grid=(N_pad // NB,),
            in_specs=[
                pl.BlockSpec((NB, C_pad, HW), lambda g: (g, 0, 0)),      # images (also residual)
                pl.BlockSpec((C_pad, 9 * C_pad + 1), lambda g: (0, 0)),  # conv1 weights + bias
                pl.BlockSpec((C_pad, 9 * C_pad + 1), lambda g: (0, 0)),  # conv2 weights + bias
            ],
            out_specs=pl.BlockSpec((NB, C_pad, HW), lambda g: (g, 0, 0)),
        ),
        compiler_params=pltpu.CompilerParams(
            # Batch groups are independent -> v7x can shard them across its two
            # TensorCores; harmless on single-TC v5e/v6e.
            dimension_semantics=("parallel",),
            vmem_limit_bytes=32 * 1024 * 1024),
    )(x2d, w1_aug, w2_aug)

    return out2d[:N, :C, :].reshape(N, C, H, W)


def weight_norm_effective(v, g):
    """PyTorch weight_norm (dim=0): w = g * v / ||v|| with norm over (Cin, kh, kw)."""
    norm = jnp.sqrt(jnp.sum(v.astype(jnp.float32) ** 2, axis=(1, 2, 3), keepdims=True))
    return (g.reshape(-1, 1, 1, 1) * v / norm).astype(jnp.float32)


def _reference(x_nchw, w1, b1, w2, b2):
    def conv(x, w, b):
        y = jax.lax.conv_general_dilated(
            x, w, window_strides=(1, 1), padding=((1, 1), (1, 1)),
            dimension_numbers=("NCHW", "OIHW", "NCHW"),
            precision=jax.lax.Precision.HIGHEST)
        return y + b[None, :, None, None]
    out = jnp.maximum(conv(x_nchw, w1, b1), 0.0)
    out = conv(out, w2, b2)
    return out + x_nchw


if __name__ == "__main__":
    key = jax.random.PRNGKey(0)
    N, C, H, W = 2, 4, 16, 16

    k_x, k_v1, k_g1, k_b1, k_v2, k_g2, k_b2 = jax.random.split(key, 7)
    x = jax.random.normal(k_x, (N, C, H, W), dtype=jnp.float32)

    # Deterministic weight-norm parameters (v, g) for both convs.
    v1 = jax.random.normal(k_v1, (C, C, 3, 3), dtype=jnp.float32) * 0.2
    g1 = jax.random.uniform(k_g1, (C,), minval=0.5, maxval=1.5)
    b1 = jax.random.normal(k_b1, (C,), dtype=jnp.float32) * 0.1
    v2 = jax.random.normal(k_v2, (C, C, 3, 3), dtype=jnp.float32) * 0.2
    g2 = jax.random.uniform(k_g2, (C,), minval=0.5, maxval=1.5)
    b2 = jax.random.normal(k_b2, (C,), dtype=jnp.float32) * 0.1

    w1 = weight_norm_effective(v1, g1)
    w2 = weight_norm_effective(v2, g2)

    out = jax.block_until_ready(residual_block_pallas(x, w1, b1, w2, b2))

    ref = _reference(x, w1, b1, w2, b2)
    assert out.shape == (N, C, H, W)
    assert jnp.allclose(out, ref, atol=1e-3, rtol=1e-3), "mismatch vs reference"

    print("KERNEL_OK")
</pallas_src>

<mosaic_0001>
module attributes {stable_mosaic.version = 11 : i64} {
  func.func @kernel(%arg0: i32, %arg1: memref<2x8x256xf32, #tpu.memory_space<vmem>>, %arg2: memref<8x73xf32, #tpu.memory_space<vmem>>, %arg3: memref<8x73xf32, #tpu.memory_space<vmem>>, %arg4: memref<2x8x256xf32, #tpu.memory_space<vmem>>) attributes {dimension_semantics = [#tpu.dimension_semantics<parallel>], iteration_bounds = array<i64: 1>, scalar_prefetch = 0 : i64, scratch_operands = 0 : i64, tpu.core_type = #tpu.core_type<tc>, window_params = [{transform_indices = @transform_0, window_bounds = array<i64: 2, 8, 256>}, {pipeline_mode = #tpu.pipeline_mode<synchronous>, transform_indices = @transform_1, window_bounds = array<i64: 8, 73>}, {pipeline_mode = #tpu.pipeline_mode<synchronous>, transform_indices = @transform_2, window_bounds = array<i64: 8, 73>}, {transform_indices = @transform_3, window_bounds = array<i64: 2, 8, 256>}]} {
    %0 = tpu.iota {dimensions = array<i32: 1>} : vector<8x256xi32>
    %c16_i32 = arith.constant 16 : i32
    %c0_i32 = arith.constant 0 : i32
    %1 = arith.cmpi eq, %c16_i32, %c0_i32 : i32
    %c1_i32 = arith.constant 1 : i32
    %2 = arith.select %1, %c1_i32, %c16_i32 : i32
    %3 = vector.broadcast %2 : i32 to vector<8x256xi32>
    %4 = arith.remsi %0, %3 : vector<8x256xi32>
    %c0_i32_0 = arith.constant 0 : i32
    %5 = vector.broadcast %c0_i32_0 : i32 to vector<8x256xi32>
    %6 = arith.cmpi ne, %4, %5 : vector<8x256xi32>
    %c0_i32_1 = arith.constant 0 : i32
    %7 = vector.broadcast %c0_i32_1 : i32 to vector<8x256xi32>
    %8 = arith.cmpi slt, %4, %7 : vector<8x256xi32>
    %c0_i32_2 = arith.constant 0 : i32
    %9 = arith.cmpi slt, %2, %c0_i32_2 : i32
    %10 = vector.broadcast %9 : i1 to vector<8x256xi1>
    %11 = vector.broadcast %10 : vector<8x256xi1> to vector<8x256xi1>
    %12 = arith.xori %8, %11 : vector<8x256xi1>
    %13 = arith.andi %12, %6 : vector<8x256xi1>
    %14 = vector.broadcast %2 : i32 to vector<8x256xi32>
    %15 = arith.addi %4, %14 : vector<8x256xi32>
    %16 = arith.select %13, %15, %4 : vector<8x256xi1>, vector<8x256xi32>
    %c1_i32_3 = arith.constant 1 : i32
    %17 = vector.broadcast %c1_i32_3 : i32 to vector<8x256xi32>
    %18 = arith.cmpi sge, %16, %17 : vector<8x256xi32>
    %c14_i32 = arith.constant 14 : i32
    %19 = vector.broadcast %c14_i32 : i32 to vector<8x256xi32>
    %20 = arith.cmpi sle, %16, %19 : vector<8x256xi32>
    %c16_i32_4 = arith.constant 16 : i32
    %21 = vector.broadcast %c16_i32_4 : i32 to vector<8x256xi32>
    %22 = arith.cmpi sge, %0, %21 : vector<8x256xi32>
    %c240_i32 = arith.constant 240 : i32
    %23 = vector.broadcast %c240_i32 : i32 to vector<8x256xi32>
    %24 = arith.cmpi slt, %0, %23 : vector<8x256xi32>
    %c0 = arith.constant 0 : index
    %c0_5 = arith.constant 0 : index
    %25 = vector.load %arg2[%c0, %c0_5] : memref<8x73xf32, #tpu.memory_space<vmem>>, vector<8x73xf32>
    %c0_6 = arith.constant 0 : index
    %c0_7 = arith.constant 0 : index
    %26 = vector.load %arg3[%c0_6, %c0_7] : memref<8x73xf32, #tpu.memory_space<vmem>>, vector<8x73xf32>
    %cst = arith.constant 1.000000e+00 : f32
    %27 = vector.broadcast %cst : f32 to vector<1x256xf32>
    %c0_8 = arith.constant 0 : index
    %c0_9 = arith.constant 0 : index
    %c0_10 = arith.constant 0 : index
    %28 = vector.load %arg1[%c0_8, %c0_9, %c0_10] : memref<2x8x256xf32, #tpu.memory_space<vmem>>, vector<1x8x256xf32>
    %29 = vector.shape_cast %28 : vector<1x8x256xf32> to vector<8x256xf32>
    %c1_i32_11 = arith.constant 1 : i32
    %30 = tpu.dynamic_rotate %29 by %c1_i32_11 dim 1 : vector<8x256xf32>, i32 -> vector<8x256xf32>
    %cst_12 = arith.constant 0.000000e+00 : f32
    %31 = vector.broadcast %cst_12 : f32 to vector<8x256xf32>
    %32 = arith.select %18, %30, %31 : vector<8x256xi1>, vector<8x256xf32>
    %c255_i32 = arith.constant 255 : i32
    %33 = tpu.dynamic_rotate %29 by %c255_i32 dim 1 : vector<8x256xf32>, i32 -> vector<8x256xf32>
    %cst_13 = arith.constant 0.000000e+00 : f32
    %34 = vector.broadcast %cst_13 : f32 to vector<8x256xf32>
    %35 = arith.select %20, %33, %34 : vector<8x256xi1>, vector<8x256xf32>
    %c16_i32_14 = arith.constant 16 : i32
    %36 = tpu.dynamic_rotate %32 by %c16_i32_14 dim 1 : vector<8x256xf32>, i32 -> vector<8x256xf32>
    %cst_15 = arith.constant 0.000000e+00 : f32
    %37 = vector.broadcast %cst_15 : f32 to vector<8x256xf32>
    %38 = arith.select %22, %36, %37 : vector<8x256xi1>, vector<8x256xf32>
    %c16_i32_16 = arith.constant 16 : i32
    %39 = tpu.dynamic_rotate %29 by %c16_i32_16 dim 1 : vector<8x256xf32>, i32 -> vector<8x256xf32>
    %cst_17 = arith.constant 0.000000e+00 : f32
    %40 = vector.broadcast %cst_17 : f32 to vector<8x256xf32>
    %41 = arith.select %22, %39, %40 : vector<8x256xi1>, vector<8x256xf32>
    %c16_i32_18 = arith.constant 16 : i32
    %42 = tpu.dynamic_rotate %35 by %c16_i32_18 dim 1 : vector<8x256xf32>, i32 -> vector<8x256xf32>
    %cst_19 = arith.constant 0.000000e+00 : f32
    %43 = vector.broadcast %cst_19 : f32 to vector<8x256xf32>
    %44 = arith.select %22, %42, %43 : vector<8x256xi1>, vector<8x256xf32>
    %c240_i32_20 = arith.constant 240 : i32
    %45 = tpu.dynamic_rotate %32 by %c240_i32_20 dim 1 : vector<8x256xf32>, i32 -> vector<8x256xf32>
    %cst_21 = arith.constant 0.000000e+00 : f32
    %46 = vector.broadcast %cst_21 : f32 to vector<8x256xf32>
    %47 = arith.select %24, %45, %46 : vector<8x256xi1>, vector<8x256xf32>
    %c240_i32_22 = arith.constant 240 : i32
    %48 = tpu.dynamic_rotate %29 by %c240_i32_22 dim 1 : vector<8x256xf32>, i32 -> vector<8x256xf32>
    %cst_23 = arith.constant 0.000000e+00 : f32
    %49 = vector.broadcast %cst_23 : f32 to vector<8x256xf32>
    %50 = arith.select %24, %48, %49 : vector<8x256xi1>, vector<8x256xf32>
    %c240_i32_24 = arith.constant 240 : i32
    %51 = tpu.dynamic_rotate %35 by %c240_i32_24 dim 1 : vector<8x256xf32>, i32 -> vector<8x256xf32>
    %cst_25 = arith.constant 0.000000e+00 : f32
    %52 = vector.broadcast %cst_25 : f32 to vector<8x256xf32>
    %53 = arith.select %24, %51, %52 : vector<8x256xi1>, vector<8x256xf32>
    %54 = tpu.concatenate %38, %41, %44, %32, %29, %35, %47, %50, %53, %27 in 0 : vector<8x256xf32>, vector<8x256xf32>, vector<8x256xf32>, vector<8x256xf32>, vector<8x256xf32>, vector<8x256xf32>, vector<8x256xf32>, vector<8x256xf32>, vector<8x256xf32>, vector<1x256xf32> -> vector<73x256xf32>
    %cst_26 = arith.constant dense<0.000000e+00> : vector<8x256xf32>
    %55 = tpu.matmul %25, %54, %cst_26 {dimension_numbers = #tpu.dot_dimension_numbers<[1], [0], [0], [1], [0, 0, 1, 1], [], []>} : vector<8x73xf32>, vector<73x256xf32>, vector<8x256xf32> -> vector<8x256xf32>
    %cst_27 = arith.constant 0.000000e+00 : f32
    %56 = vector.broadcast %cst_27 : f32 to vector<8x256xf32>
    %57 = arith.maximumf %55, %56 : vector<8x256xf32>
    %c1_i32_28 = arith.constant 1 : i32
    %58 = tpu.dynamic_rotate %57 by %c1_i32_28 dim 1 : vector<8x256xf32>, i32 -> vector<8x256xf32>
    %cst_29 = arith.constant 0.000000e+00 : f32
    %59 = vector.broadcast %cst_29 : f32 to vector<8x256xf32>
    %60 = arith.select %18, %58, %59 : vector<8x256xi1>, vector<8x256xf32>
    %c255_i32_30 = arith.constant 255 : i32
    %61 = tpu.dynamic_rotate %57 by %c255_i32_30 dim 1 : vector<8x256xf32>, i32 -> vector<8x256xf32>
    %cst_31 = arith.constant 0.000000e+00 : f32
    %62 = vector.broadcast %cst_31 : f32 to vector<8x256xf32>
    %63 = arith.select %20, %61, %62 : vector<8x256xi1>, vector<8x256xf32>
    %c16_i32_32 = arith.constant 16 : i32
    %64 = tpu.dynamic_rotate %60 by %c16_i32_32 dim 1 : vector<8x256xf32>, i32 -> vector<8x256xf32>
    %cst_33 = arith.constant 0.000000e+00 : f32
    %65 = vector.broadcast %cst_33 : f32 to vector<8x256xf32>
    %66 = arith.select %22, %64, %65 : vector<8x256xi1>, vector<8x256xf32>
    %c16_i32_34 = arith.constant 16 : i32
    %67 = tpu.dynamic_rotate %57 by %c16_i32_34 dim 1 : vector<8x256xf32>, i32 -> vector<8x256xf32>
    %cst_35 = arith.constant 0.000000e+00 : f32
    %68 = vector.broadcast %cst_35 : f32 to vector<8x256xf32>
    %69 = arith.select %22, %67, %68 : vector<8x256xi1>, vector<8x256xf32>
    %c16_i32_36 = arith.constant 16 : i32
    %70 = tpu.dynamic_rotate %63 by %c16_i32_36 dim 1 : vector<8x256xf32>, i32 -> vector<8x256xf32>
    %cst_37 = arith.constant 0.000000e+00 : f32
    %71 = vector.broadcast %cst_37 : f32 to vector<8x256xf32>
    %72 = arith.select %22, %70, %71 : vector<8x256xi1>, vector<8x256xf32>
    %c240_i32_38 = arith.constant 240 : i32
    %73 = tpu.dynamic_rotate %60 by %c240_i32_38 dim 1 : vector<8x256xf32>, i32 -> vector<8x256xf32>
    %cst_39 = arith.constant 0.000000e+00 : f32
    %74 = vector.broadcast %cst_39 : f32 to vector<8x256xf32>
    %75 = arith.select %24, %73, %74 : vector<8x256xi1>, vector<8x256xf32>
    %c240_i32_40 = arith.constant 240 : i32
    %76 = tpu.dynamic_rotate %57 by %c240_i32_40 dim 1 : vector<8x256xf32>, i32 -> vector<8x256xf32>
    %cst_41 = arith.constant 0.000000e+00 : f32
    %77 = vector.broadcast %cst_41 : f32 to vector<8x256xf32>
    %78 = arith.select %24, %76, %77 : vector<8x256xi1>, vector<8x256xf32>
    %c240_i32_42 = arith.constant 240 : i32
    %79 = tpu.dynamic_rotate %63 by %c240_i32_42 dim 1 : vector<8x256xf32>, i32 -> vector<8x256xf32>
    %cst_43 = arith.constant 0.000000e+00 : f32
    %80 = vector.broadcast %cst_43 : f32 to vector<8x256xf32>
    %81 = arith.select %24, %79, %80 : vector<8x256xi1>, vector<8x256xf32>
    %82 = tpu.concatenate %66, %69, %72, %60, %57, %63, %75, %78, %81, %27 in 0 : vector<8x256xf32>, vector<8x256xf32>, vector<8x256xf32>, vector<8x256xf32>, vector<8x256xf32>, vector<8x256xf32>, vector<8x256xf32>, vector<8x256xf32>, vector<8x256xf32>, vector<1x256xf32> -> vector<73x256xf32>
    %cst_44 = arith.constant dense<0.000000e+00> : vector<8x256xf32>
    %83 = tpu.matmul %26, %82, %cst_44 {dimension_numbers = #tpu.dot_dimension_numbers<[1], [0], [0], [1], [0, 0, 1, 1], [], []>} : vector<8x73xf32>, vector<73x256xf32>, vector<8x256xf32> -> vector<8x256xf32>
    %84 = arith.addf %83, %29 : vector<8x256xf32>
    %c0_45 = arith.constant 0 : index
    %c0_46 = arith.constant 0 : index
    %c0_47 = arith.constant 0 : index
    %85 = vector.load %arg4[%c0_45, %c0_46, %c0_47] : memref<2x8x256xf32, #tpu.memory_space<vmem>>, vector<1x8x256xf32>
    %86 = vector.shape_cast %85 : vector<1x8x256xf32> to vector<8x256xf32>
    %87 = vector.shape_cast %84 : vector<8x256xf32> to vector<1x8x256xf32>
    tpu.vector_store %arg4[%c0_45, %c0_46, %c0_47], %87 {strides = array<i32>} : memref<2x8x256xf32, #tpu.memory_space<vmem>>, vector<1x8x256xf32>,
    %c1 = arith.constant 1 : index
    %c0_48 = arith.constant 0 : index
    %c0_49 = arith.constant 0 : index
    %88 = vector.load %arg1[%c1, %c0_48, %c0_49] : memref<2x8x256xf32, #tpu.memory_space<vmem>>, vector<1x8x256xf32>
    %89 = vector.shape_cast %88 : vector<1x8x256xf32> to vector<8x256xf32>
    %c1_i32_50 = arith.constant 1 : i32
    %90 = tpu.dynamic_rotate %89 by %c1_i32_50 dim 1 : vector<8x256xf32>, i32 -> vector<8x256xf32>
    %cst_51 = arith.constant 0.000000e+00 : f32
    %91 = vector.broadcast %cst_51 : f32 to vector<8x256xf32>
    %92 = arith.select %18, %90, %91 : vector<8x256xi1>, vector<8x256xf32>
    %c255_i32_52 = arith.constant 255 : i32
    %93 = tpu.dynamic_rotate %89 by %c255_i32_52 dim 1 : vector<8x256xf32>, i32 -> vector<8x256xf32>
    %cst_53 = arith.constant 0.000000e+00 : f32
    %94 = vector.broadcast %cst_53 : f32 to vector<8x256xf32>
    %95 = arith.select %20, %93, %94 : vector<8x256xi1>, vector<8x256xf32>
    %c16_i32_54 = arith.constant 16 : i32
    %96 = tpu.dynamic_rotate %92 by %c16_i32_54 dim 1 : vector<8x256xf32>, i32 -> vector<8x256xf32>
    %cst_55 = arith.constant 0.000000e+00 : f32
    %97 = vector.broadcast %cst_55 : f32 to vector<8x256xf32>
    %98 = arith.select %22, %96, %97 : vector<8x256xi1>, vector<8x256xf32>
    %c16_i32_56 = arith.constant 16 : i32
    %99 = tpu.dynamic_rotate %89 by %c16_i32_56 dim 1 : vector<8x256xf32>, i32 -> vector<8x256xf32>
    %cst_57 = arith.constant 0.000000e+00 : f32
    %100 = vector.broadcast %cst_57 : f32 to vector<8x256xf32>
    %101 = arith.select %22, %99, %100 : vector<8x256xi1>, vector<8x256xf32>
    %c16_i32_58 = arith.constant 16 : i32
    %102 = tpu.dynamic_rotate %95 by %c16_i32_58 dim 1 : vector<8x256xf32>, i32 -> vector<8x256xf32>
    %cst_59 = arith.constant 0.000000e+00 : f32
    %103 = vector.broadcast %cst_59 : f32 to vector<8x256xf32>
    %104 = arith.select %22, %102, %103 : vector<8x256xi1>, vector<8x256xf32>
    %c240_i32_60 = arith.constant 240 : i32
    %105 = tpu.dynamic_rotate %92 by %c240_i32_60 dim 1 : vector<8x256xf32>, i32 -> vector<8x256xf32>
    %cst_61 = arith.constant 0.000000e+00 : f32
    %106 = vector.broadcast %cst_61 : f32 to vector<8x256xf32>
    %107 = arith.select %24, %105, %106 : vector<8x256xi1>, vector<8x256xf32>
    %c240_i32_62 = arith.constant 240 : i32
    %108 = tpu.dynamic_rotate %89 by %c240_i32_62 dim 1 : vector<8x256xf32>, i32 -> vector<8x256xf32>
    %cst_63 = arith.constant 0.000000e+00 : f32
    %109 = vector.broadcast %cst_63 : f32 to vector<8x256xf32>
    %110 = arith.select %24, %108, %109 : vector<8x256xi1>, vector<8x256xf32>
    %c240_i32_64 = arith.constant 240 : i32
    %111 = tpu.dynamic_rotate %95 by %c240_i32_64 dim 1 : vector<8x256xf32>, i32 -> vector<8x256xf32>
    %cst_65 = arith.constant 0.000000e+00 : f32
    %112 = vector.broadcast %cst_65 : f32 to vector<8x256xf32>
    %113 = arith.select %24, %111, %112 : vector<8x256xi1>, vector<8x256xf32>
    %114 = tpu.concatenate %98, %101, %104, %92, %89, %95, %107, %110, %113, %27 in 0 : vector<8x256xf32>, vector<8x256xf32>, vector<8x256xf32>, vector<8x256xf32>, vector<8x256xf32>, vector<8x256xf32>, vector<8x256xf32>, vector<8x256xf32>, vector<8x256xf32>, vector<1x256xf32> -> vector<73x256xf32>
    %cst_66 = arith.constant dense<0.000000e+00> : vector<8x256xf32>
    %115 = tpu.matmul %25, %114, %cst_66 {dimension_numbers = #tpu.dot_dimension_numbers<[1], [0], [0], [1], [0, 0, 1, 1], [], []>} : vector<8x73xf32>, vector<73x256xf32>, vector<8x256xf32> -> vector<8x256xf32>
    %cst_67 = arith.constant 0.000000e+00 : f32
    %116 = vector.broadcast %cst_67 : f32 to vector<8x256xf32>
    %117 = arith.maximumf %115, %116 : vector<8x256xf32>
    %c1_i32_68 = arith.constant 1 : i32
    %118 = tpu.dynamic_rotate %117 by %c1_i32_68 dim 1 : vector<8x256xf32>, i32 -> vector<8x256xf32>
    %cst_69 = arith.constant 0.000000e+00 : f32
    %119 = vector.broadcast %cst_69 : f32 to vector<8x256xf32>
    %120 = arith.select %18, %118, %119 : vector<8x256xi1>, vector<8x256xf32>
    %c255_i32_70 = arith.constant 255 : i32
    %121 = tpu.dynamic_rotate %117 by %c255_i32_70 dim 1 : vector<8x256xf32>, i32 -> vector<8x256xf32>
    %cst_71 = arith.constant 0.000000e+00 : f32
    %122 = vector.broadcast %cst_71 : f32 to vector<8x256xf32>
    %123 = arith.select %20, %121, %122 : vector<8x256xi1>, vector<8x256xf32>
    %c16_i32_72 = arith.constant 16 : i32
    %124 = tpu.dynamic_rotate %120 by %c16_i32_72 dim 1 : vector<8x256xf32>, i32 -> vector<8x256xf32>
    %cst_73 = arith.constant 0.000000e+00 : f32
    %125 = vector.broadcast %cst_73 : f32 to vector<8x256xf32>
    %126 = arith.select %22, %124, %125 : vector<8x256xi1>, vector<8x256xf32>
    %c16_i32_74 = arith.constant 16 : i32
    %127 = tpu.dynamic_rotate %117 by %c16_i32_74 dim 1 : vector<8x256xf32>, i32 -> vector<8x256xf32>
    %cst_75 = arith.constant 0.000000e+00 : f32
    %128 = vector.broadcast %cst_75 : f32 to vector<8x256xf32>
    %129 = arith.select %22, %127, %128 : vector<8x256xi1>, vector<8x256xf32>
    %c16_i32_76 = arith.constant 16 : i32
    %130 = tpu.dynamic_rotate %123 by %c16_i32_76 dim 1 : vector<8x256xf32>, i32 -> vector<8x256xf32>
    %cst_77 = arith.constant 0.000000e+00 : f32
    %131 = vector.broadcast %cst_77 : f32 to vector<8x256xf32>
    %132 = arith.select %22, %130, %131 : vector<8x256xi1>, vector<8x256xf32>
    %c240_i32_78 = arith.constant 240 : i32
    %133 = tpu.dynamic_rotate %120 by %c240_i32_78 dim 1 : vector<8x256xf32>, i32 -> vector<8x256xf32>
    %cst_79 = arith.constant 0.000000e+00 : f32
    %134 = vector.broadcast %cst_79 : f32 to vector<8x256xf32>
    %135 = arith.select %24, %133, %134 : vector<8x256xi1>, vector<8x256xf32>
    %c240_i32_80 = arith.constant 240 : i32
    %136 = tpu.dynamic_rotate %117 by %c240_i32_80 dim 1 : vector<8x256xf32>, i32 -> vector<8x256xf32>
    %cst_81 = arith.constant 0.000000e+00 : f32
    %137 = vector.broadcast %cst_81 : f32 to vector<8x256xf32>
    %138 = arith.select %24, %136, %137 : vector<8x256xi1>, vector<8x256xf32>
    %c240_i32_82 = arith.constant 240 : i32
    %139 = tpu.dynamic_rotate %123 by %c240_i32_82 dim 1 : vector<8x256xf32>, i32 -> vector<8x256xf32>
    %cst_83 = arith.constant 0.000000e+00 : f32
    %140 = vector.broadcast %cst_83 : f32 to vector<8x256xf32>
    %141 = arith.select %24, %139, %140 : vector<8x256xi1>, vector<8x256xf32>
    %142 = tpu.concatenate %126, %129, %132, %120, %117, %123, %135, %138, %141, %27 in 0 : vector<8x256xf32>, vector<8x256xf32>, vector<8x256xf32>, vector<8x256xf32>, vector<8x256xf32>, vector<8x256xf32>, vector<8x256xf32>, vector<8x256xf32>, vector<8x256xf32>, vector<1x256xf32> -> vector<73x256xf32>
    %cst_84 = arith.constant dense<0.000000e+00> : vector<8x256xf32>
    %143 = tpu.matmul %26, %142, %cst_84 {dimension_numbers = #tpu.dot_dimension_numbers<[1], [0], [0], [1], [0, 0, 1, 1], [], []>} : vector<8x73xf32>, vector<73x256xf32>, vector<8x256xf32> -> vector<8x256xf32>
    %144 = arith.addf %143, %89 : vector<8x256xf32>
    %c1_85 = arith.constant 1 : index
    %c0_86 = arith.constant 0 : index
    %c0_87 = arith.constant 0 : index
    %145 = vector.load %arg4[%c1_85, %c0_86, %c0_87] : memref<2x8x256xf32, #tpu.memory_space<vmem>>, vector<1x8x256xf32>
    %146 = vector.shape_cast %145 : vector<1x8x256xf32> to vector<8x256xf32>
    %147 = vector.shape_cast %144 : vector<8x256xf32> to vector<1x8x256xf32>
    tpu.vector_store %arg4[%c1_85, %c0_86, %c0_87], %147 {strides = array<i32>} : memref<2x8x256xf32, #tpu.memory_space<vmem>>, vector<1x8x256xf32>,
    return
  }
  func.func @transform_0(%arg0: i32) -> (i32, i32, i32) {
    %c0_i32 = arith.constant 0 : i32
    %c0_i32_0 = arith.constant 0 : i32
    %c0_i32_1 = arith.constant 0 : i32
    return %arg0, %c0_i32, %c0_i32_0 : i32, i32, i32
  }
  func.func @transform_1(%arg0: i32) -> (i32, i32) {
    %c0_i32 = arith.constant 0 : i32
    %c0_i32_0 = arith.constant 0 : i32
    %c0_i32_1 = arith.constant 0 : i32
    return %c0_i32, %c0_i32_0 : i32, i32
  }
  func.func @transform_2(%arg0: i32) -> (i32, i32) {
    %c0_i32 = arith.constant 0 : i32
    %c0_i32_0 = arith.constant 0 : i32
    %c0_i32_1 = arith.constant 0 : i32
    return %c0_i32, %c0_i32_0 : i32, i32
  }
  func.func @transform_3(%arg0: i32) -> (i32, i32, i32) {
    %c0_i32 = arith.constant 0 : i32
    %c0_i32_0 = arith.constant 0 : i32
    %c0_i32_1 = arith.constant 0 : i32
    return %arg0, %c0_i32, %c0_i32_0 : i32, i32, i32
  }
}

</mosaic_0001>

<llo_original>
// kernel: tpu_custom_call.1
$region0: #{tpu_custom_call.1}
  #allocation0 [shape = 'u32[]', space=smem, size = 0x4, offset = 0x4, fixed_abs, tag = 'smem constant byte address 0x4 - core index']
  #allocation1 [shape = 'u32[144,128]{1,0:T(1,128)}', space=vmem, size = 0x12000, scoped, tag = 'internal scratch']
  %s0 = inlined_call_operand.hbm [shape: f32[2,8,256], index: 0, kind: input, shape index: {}]
  %s1 = inlined_call_operand.hbm [shape: f32[8,73], index: 1, kind: input, shape index: {}]
  %s2 = inlined_call_operand.hbm [shape: f32[8,73], index: 2, kind: input, shape index: {}]
  %s3 = inlined_call_operand.hbm [shape: f32[2,8,256], index: 3, kind: output, shape index: {}]
  %s4 = sld [smem:[#allocation0]]
  $region34: #{tpu_custom_call.1} parent=0
    _
  %s6 = ssub.s32 1, %s4
  %s7 = scalar_select 0, %s6, %s4
  $region1: #{tpu_custom_call.1} parent=0
    #allocation2 [shape = 'u8[16384]{0}', space=vmem, size = 0x4000, scoped, tag = 'input window, operand 0, single buffered']
    #allocation3 [shape = 's32[1]{0}', space=sflag, size = 0x4, scoped, tag = 'scoped memory for tpu_custom_call.1']
    #allocation4 [shape = 's32[1]{0}', space=sflag, size = 0x4, scoped, tag = 'scoped memory for tpu_custom_call.1']
    #allocation5 [shape = 'u8[4096]{0}', space=vmem, size = 0x1000, scoped, tag = 'input window, operand 1, single buffered']
    #allocation6 [shape = 's32[1]{0}', space=sflag, size = 0x4, scoped, tag = 'scoped memory for tpu_custom_call.1']
    #allocation7 [shape = 'u8[4096]{0}', space=vmem, size = 0x1000, scoped, tag = 'input window, operand 2, single buffered']
    #allocation8 [shape = 'u8[16384]{0}', space=vmem, size = 0x4000, scoped, tag = 'output window, operand 0, single buffered']
    %8 = vsyncpa [#allocation3], 0
    %9 = vsyncpa [#allocation6], 0
    %10 = vsyncpa [#allocation4], 0
    // Predicated region
    $region2: #{tpu_custom_call.1} parent=1 // pred_check
      _
    $region3: #{tpu_custom_call.1} parent=1 // pred_check_branch
      %12 = sbr.rel (0) target = $region5
    $region4: #{tpu_custom_call.1} parent=1 // pred_region
      %s14 = ssub.s32 512, 512
      %15 = vsyncadd [#allocation3], %s14
      %s16 = sshll.u32 [#allocation2], 4
      %s17 = int_to_ptr.vmem [resolvable:$true] %s16
      %22 = dma.hbm_to_vmem [thread:$0]  %s0, 512, %s17, [#allocation3], 256, 256, 16
    $region5: #{tpu_custom_call.1} parent=1 // pred_fallthru
      _
    // Predicated region
    $region6: #{tpu_custom_call.1} parent=1 // pred_check
      _
    $region7: #{tpu_custom_call.1} parent=1 // pred_check_branch
      %24 = sbr.rel (0) target = $region9
    $region8: #{tpu_custom_call.1} parent=1 // pred_region
      %s26 = ssub.s32 128, 128
      %27 = vsyncadd [#allocation6], %s26
      %s29 = sshll.u32 [#allocation5], 4
      %s30 = int_to_ptr.vmem [resolvable:$true] %s29
      %32 = dma.hbm_to_vmem [thread:$0]  %s1, 128, %s30, [#allocation6]
    $region9: #{tpu_custom_call.1} parent=1 // pred_fallthru
      _
    // Predicated region
    $region10: #{tpu_custom_call.1} parent=1 // pred_check
      _
    $region11: #{tpu_custom_call.1} parent=1 // pred_check_branch
      %34 = sbr.rel (0) target = $region13
    $region12: #{tpu_custom_call.1} parent=1 // pred_region
      %s36 = ssub.s32 128, 128
      %37 = vsyncadd [#allocation6], %s36
      %s39 = sshll.u32 [#allocation7], 4
      %s40 = int_to_ptr.vmem [resolvable:$true] %s39
      %42 = dma.hbm_to_vmem [thread:$0]  %s2, 128, %s40, [#allocation6]
    $region13: #{tpu_custom_call.1} parent=1 // pred_fallthru
      _
    // Predicated region
    $region14: #{tpu_custom_call.1} parent=1 // pred_check
      _
    $region15: #{tpu_custom_call.1} parent=1 // pred_check_branch
      %44 = sbr.rel (0) target = $region17
    $region16: #{tpu_custom_call.1} parent=1 // pred_region
      %45 = dma.done [#allocation3], 512
    $region17: #{tpu_custom_call.1} parent=1 // pred_fallthru
      _
    // Predicated region
    $region18: #{tpu_custom_call.1} parent=1 // pred_check
      _
    $region19: #{tpu_custom_call.1} parent=1 // pred_check_branch
      %47 = sbr.rel (0) target = $region21
    $region20: #{tpu_custom_call.1} parent=1 // pred_region
      %48 = dma.done [#allocation6], 128
    $region21: #{tpu_custom_call.1} parent=1 // pred_fallthru
      _
    // Predicated region
    $region22: #{tpu_custom_call.1} parent=1 // pred_check
      _
    $region23: #{tpu_custom_call.1} parent=1 // pred_check_branch
      %50 = sbr.rel (0) target = $region25
    $region24: #{tpu_custom_call.1} parent=1 // pred_region
      %51 = dma.done [#allocation6], 128
    $region25: #{tpu_custom_call.1} parent=1 // pred_fallthru
      _
    %v52 = vlaneseq
    %v53 = vand.u32 %v52, 127
    %v54 = vadd.s32 %v53, 128
    %vm55 = vcmp.lt.s32.totalorder %v53, 0
    %v56 = vsub.s32 0, %v53
    %v57 = vsel %vm55, %v56, %v53
    %v58 = vshrl.u32 %v57, 4
    %v59 = vand.u32 %v57, 15
    %v60 = vsub.s32 0, %v59
    %v61 = vsel %vm55, %v60, %v59
    %vm62 = vcmp.lt.s32.totalorder %v54, 0
    %v63 = vsub.s32 0, %v54
    %v64 = vsel %vm62, %v63, %v54
    %v65 = vshrl.u32 %v64, 4
    %v66 = vand.u32 %v64, 15
    %v67 = vsub.s32 0, %v66
    %v68 = vsel %vm62, %v67, %v66
    %vm69 = vcmp.ne.s32.totalorder %v61, 0
    %vm70 = vcmp.ne.s32.totalorder %v68, 0
    %vm71 = vcmp.lt.s32.totalorder %v61, 0
    %vm72 = vcmp.lt.s32.totalorder %v68, 0
    %vm73 = vmand %vm71, %vm69
    %vm74 = vmand %vm72, %vm70
    %v75 = vadd.s32 %v61, 16
    %v76 = vadd.s32 %v68, 16
    %v77 = vsel %vm73, %v75, %v61
    %v78 = vsel %vm74, %v76, %v68
    %vm79 = vcmp.ge.s32.totalorder %v77, 1
    %vm80 = vcmp.ge.s32.totalorder %v78, 1
    %vm81 = vcmp.le.s32.totalorder %v77, 14
    %vm82 = vcmp.le.s32.totalorder %v78, 14
    %vm83 = vcmp.ge.s32.totalorder %v53, 16
    %vm84 = vcmp.ge.s32.totalorder %v54, 16
    %vm85 = vcmp.lt.s32.totalorder %v53, 240
    %vm86 = vcmp.lt.s32.totalorder %v54, 240
    %v87 = vld [vmem:[#allocation5] sm:$0xff]
    %v88 = vld [vmem:[#allocation7] sm:$0xff]
    %v89 = vld [vmem:[#allocation2] sm:$0xff]
    %v90 = vld [vmem:[#allocation2 + $0x8] sm:$0xff]
    %91 = vrot.lane.b32.xlu0 %v89, 1
    %v92 = vpop.permute.xlu0 %91
    %93 = vrot.lane.b32.xlu0 %v90, 1
    %v94 = vpop.permute.xlu0 %93
    %vm95 = vcmp.lt.s32.totalorder %v53, 1
    %v96 = vsel %vm95, %v92, %v94
    %v97 = vsel %vm95, %v94, %v92
    %v98 = vsel %vm79, %v97, 0.0
    %v99 = vsel %vm80, %v96, 0.0
    %100 = vrot.lane.b32.xlu0 %v89, 127
    %v101 = vpop.permute.xlu0 %100
    %102 = vrot.lane.b32.xlu0 %v90, 127
    %v103 = vpop.permute.xlu0 %102
    %vm104 = vcmp.lt.s32.totalorder %v53, 127
    %v105 = vsel %vm104, %v101, %v103
    %v106 = vsel %vm104, %v103, %v101
    %v107 = vsel %vm81, %v105, 0.0
    %v108 = vsel %vm82, %v106, 0.0
    %109 = vrot.lane.b32.xlu0 %v98, 16
    %v110 = vpop.permute.xlu0 %109
    %111 = vrot.lane.b32.xlu0 %v99, 16
    %v112 = vpop.permute.xlu0 %111
    %vm113 = vcmp.lt.s32.totalorder %v53, 16
    %v114 = vsel %vm113, %v110, %v112
    %v115 = vsel %vm113, %v112, %v110
    %v116 = vsel %vm83, %v115, 0.0
    %v117 = vsel %vm84, %v114, 0.0
    %118 = vrot.lane.b32.xlu0 %v89, 16
    %v119 = vpop.permute.xlu0 %118
    %120 = vrot.lane.b32.xlu0 %v90, 16
    %v121 = vpop.permute.xlu0 %120
    %v122 = vsel %vm113, %v119, %v121
    %v123 = vsel %vm113, %v121, %v119
    %v124 = vsel %vm83, %v123, 0.0
    %v125 = vsel %vm84, %v122, 0.0
    %126 = vrot.lane.b32.xlu0 %v107, 16
    %v127 = vpop.permute.xlu0 %126
    %128 = vrot.lane.b32.xlu0 %v108, 16
    %v129 = vpop.permute.xlu0 %128
    %v130 = vsel %vm113, %v127, %v129
    %v131 = vsel %vm113, %v129, %v127
    %v132 = vsel %vm83, %v131, 0.0
    %v133 = vsel %vm84, %v130, 0.0
    %134 = vrot.lane.b32.xlu0 %v98, 112
    %v135 = vpop.permute.xlu0 %134
    %136 = vrot.lane.b32.xlu0 %v99, 112
    %v137 = vpop.permute.xlu0 %136
    %vm138 = vcmp.lt.s32.totalorder %v53, 112
    %v139 = vsel %vm138, %v135, %v137
    %v140 = vsel %vm138, %v137, %v135
    %v141 = vsel %vm85, %v139, 0.0
    %v142 = vsel %vm86, %v140, 0.0
    %143 = vrot.lane.b32.xlu0 %v89, 112
    %v144 = vpop.permute.xlu0 %143
    %145 = vrot.lane.b32.xlu0 %v90, 112
    %v146 = vpop.permute.xlu0 %145
    %v147 = vsel %vm138, %v144, %v146
    %v148 = vsel %vm138, %v146, %v144
    %v149 = vsel %vm85, %v147, 0.0
    %v150 = vsel %vm86, %v148, 0.0
    %151 = vrot.lane.b32.xlu0 %v107, 112
    %v152 = vpop.permute.xlu0 %151
    %153 = vrot.lane.b32.xlu0 %v108, 112
    %v154 = vpop.permute.xlu0 %153
    %v155 = vsel %vm138, %v152, %v154
    %v156 = vsel %vm138, %v154, %v152
    %v157 = vsel %vm85, %v155, 0.0
    %v158 = vsel %vm86, %v156, 0.0
    %vm159 = vcmask 596992
    %v161 = vsel %vm159, %v87, 0
    %vm163 = vcmask 1040384
    %v165 = vsel %vm163, 1.0, 0
    %167 = vmatprep.subr.mxu0 %v117
    %168 = vmatpush1.msra.mxu0 %v116
    %169 = vmatprep.subr.mxu0 %v125
    %170 = vmatpush1.msra.mxu0 %v124
    %171 = vmatprep.subr.mxu0 %v133
    %172 = vmatpush1.msra.mxu0 %v132
    %173 = vmatprep.subr.mxu0 %v99
    %174 = vmatpush1.msra.mxu0 %v98
    %175 = vmatprep.subr.mxu0 %v90
    %176 = vmatpush1.msra.mxu0 %v89
    %177 = vmatprep.subr.mxu0 %v108
    %178 = vmatpush1.msra.mxu0 %v107
    %179 = vmatprep.subr.mxu0 %v142
    %180 = vmatpush1.msra.mxu0 %v141
    %181 = vmatprep.subr.mxu0 %v150
    %182 = vmatpush1.msra.mxu0 %v149
    %183 = vmatprep.subr.mxu0 %v158
    %184 = vmatpush1.msra.mxu0 %v157
    %185 = vmatprep.subr.mxu0 %v165
    %186 = vmatpush1.msra.mxu0 %v165
    %187 = vmatprep.subr.mxu0 0.0
    %188 = vmatpush1.msra.mxu0 0.0
    %189 = vmatprep.subr.mxu0 0.0
    %190 = vmatpush1.msra.mxu0 0.0
    %191 = vmatprep.subr.mxu0 0.0
    %192 = vmatpush1.msra.mxu0 0.0
    %193 = vmatprep.subr.mxu0 0.0
    %194 = vmatpush1.msra.mxu0 0.0
    %195 = vmatprep.subr.mxu0 0.0
    %196 = vmatpush1.msra.mxu0 0.0
    %197 = vmatprep.subr.mxu0 0.0
    %198 = vmatpush1.msra.mxu0 0.0
    %199 = vmatprep.subr.mxu0 0.0
    %200 = vmatpush1.msra.mxu0 0.0
    %201 = vmatprep.subr.mxu0 0.0
    %202 = vmatpush1.msra.mxu0 0.0
    %203 = vmatprep.subr.mxu0 0.0
    %204 = vmatpush1.msra.mxu0 0.0
    %205 = vmatprep.subr.mxu0 0.0
    %206 = vmatpush1.msra.mxu0 0.0
    %207 = vmatprep.subr.mxu0 0.0
    %208 = vmatpush1.msra.mxu0 0.0
    %209 = vmatprep.subr.mxu0 0.0
    %210 = vmatpush1.msra.mxu0 0.0
    %211 = vmatprep.subr.mxu0 0.0
    %212 = vmatpush1.msra.mxu0 0.0
    %213 = vmatprep.subr.mxu0 0.0
    %214 = vmatpush1.msra.mxu0 0.0
    %215 = vmatprep.subr.mxu0 0.0
    %216 = vmatpush1.msra.mxu0 0.0
    %217 = vmatprep.subr.mxu0 0.0
    %218 = vmatpush1.msra.mxu0 0.0
    %219 = vmatprep.subr.mxu0 0.0
    %220 = vmatpush1.msra.mxu0 0.0
    %221 = vmatprep.subr.mxu0 0.0
    %222 = vmatpush1.msra.mxu0 0.0
    %223 = vmatprep.subr.mxu0 0.0
    %224 = vmatpush1.msra.mxu0 0.0
    %225 = vmatprep.subr.mxu0 0.0
    %226 = vmatpush1.msra.mxu0 0.0
    %227 = vmatprep.subr.mxu0 0.0
    %228 = vmatpush1.msra.mxu0 0.0
    %229 = vmatprep.subr.mxu0 0.0
    %230 = vmatpush1.msra.mxu0 0.0
    %231 = vmatprep.mubr.f32.mxu0 0.0
    %232 = vmatmul.mubr.f32.gmra.mrb[0].mxu0 %v161
    %v233 = vpop.f32.mrb[0].mxu0
    %v234 = vadd.f32 0.0, %v233
    %v235 = vpop.f32.mrb[0].mxu0
    %v236 = vadd.f32 0.0, %v235
    %237 = vdwg.mxu0
    %v238 = vmax.f32 %v234, 0.0
    %v239 = vmax.f32 %v236, 0.0
    %240 = vrot.lane.b32.xlu0 %v238, 1
    %v241 = vpop.permute.xlu0 %240
    %242 = vrot.lane.b32.xlu0 %v239, 1
    %v243 = vpop.permute.xlu0 %242
    %v244 = vsel %vm95, %v241, %v243
    %v245 = vsel %vm95, %v243, %v241
    %v246 = vsel %vm79, %v245, 0.0
    %v247 = vsel %vm80, %v244, 0.0
    %248 = vrot.lane.b32.xlu0 %v238, 127
    %v249 = vpop.permute.xlu0 %248
    %250 = vrot.lane.b32.xlu0 %v239, 127
    %v251 = vpop.permute.xlu0 %250
    %v252 = vsel %vm104, %v249, %v251
    %v253 = vsel %vm104, %v251, %v249
    %v254 = vsel %vm81, %v252, 0.0
    %v255 = vsel %vm82, %v253, 0.0
    %256 = vrot.lane.b32.xlu0 %v246, 16
    %v257 = vpop.permute.xlu0 %256
    %258 = vrot.lane.b32.xlu0 %v247, 16
    %v259 = vpop.permute.xlu0 %258
    %v260 = vsel %vm113, %v257, %v259
    %v261 = vsel %vm113, %v259, %v257
    %v262 = vsel %vm83, %v261, 0.0
    %v263 = vsel %vm84, %v260, 0.0
    %264 = vrot.lane.b32.xlu0 %v238, 16
    %v265 = vpop.permute.xlu0 %264
    %266 = vrot.lane.b32.xlu0 %v239, 16
    %v267 = vpop.permute.xlu0 %266
    %v268 = vsel %vm113, %v265, %v267
    %v269 = vsel %vm113, %v267, %v265
    %v270 = vsel %vm83, %v269, 0.0
    %v271 = vsel %vm84, %v268, 0.0
    %272 = vrot.lane.b32.xlu0 %v254, 16
    %v273 = vpop.permute.xlu0 %272
    %274 = vrot.lane.b32.xlu0 %v255, 16
    %v275 = vpop.permute.xlu0 %274
    %v276 = vsel %vm113, %v273, %v275
    %v277 = vsel %vm113, %v275, %v273
    %v278 = vsel %vm83, %v277, 0.0
    %v279 = vsel %vm84, %v276, 0.0
    %280 = vrot.lane.b32.xlu0 %v246, 112
    %v281 = vpop.permute.xlu0 %280
    %282 = vrot.lane.b32.xlu0 %v247, 112
    %v283 = vpop.permute.xlu0 %282
    %v284 = vsel %vm138, %v281, %v283
    %v285 = vsel %vm138, %v283, %v281
    %v286 = vsel %vm85, %v284, 0.0
    %v287 = vsel %vm86, %v285, 0.0
    %288 = vrot.lane.b32.xlu0 %v238, 112
    %v289 = vpop.permute.xlu0 %288
    %290 = vrot.lane.b32.xlu0 %v239, 112
    %v291 = vpop.permute.xlu0 %290
    %v292 = vsel %vm138, %v289, %v291
    %v293 = vsel %vm138, %v291, %v289
    %v294 = vsel %vm85, %v292, 0.0
    %v295 = vsel %vm86, %v293, 0.0
    %296 = vrot.lane.b32.xlu0 %v254, 112
    %v297 = vpop.permute.xlu0 %296
    %298 = vrot.lane.b32.xlu0 %v255, 112
    %v299 = vpop.permute.xlu0 %298
    %v300 = vsel %vm138, %v297, %v299
    %v301 = vsel %vm138, %v299, %v297
    %v302 = vsel %vm85, %v300, 0.0
    %v303 = vsel %vm86, %v301, 0.0
    %v305 = vsel %vm159, %v88, 0
    %307 = vmatprep.subr.mxu0 %v263
    %308 = vmatpush1.msra.mxu0 %v262
    %309 = vmatprep.subr.mxu0 %v271
    %310 = vmatpush1.msra.mxu0 %v270
    %311 = vmatprep.subr.mxu0 %v279
    %312 = vmatpush1.msra.mxu0 %v278
    %313 = vmatprep.subr.mxu0 %v247
    %314 = vmatpush1.msra.mxu0 %v246
    %315 = vmatprep.subr.mxu0 %v239
    %316 = vmatpush1.msra.mxu0 %v238
    %317 = vmatprep.subr.mxu0 %v255
    %318 = vmatpush1.msra.mxu0 %v254
    %319 = vmatprep.subr.mxu0 %v287
    %320 = vmatpush1.msra.mxu0 %v286
    %321 = vmatprep.subr.mxu0 %v295
    %322 = vmatpush1.msra.mxu0 %v294
    %323 = vmatprep.subr.mxu0 %v303
    %324 = vmatpush1.msra.mxu0 %v302
    %325 = vmatprep.subr.mxu0 %v165
    %326 = vmatpush1.msra.mxu0 %v165
    %327 = vmatprep.subr.mxu0 0.0
    %328 = vmatpush1.msra.mxu0 0.0
    %329 = vmatprep.subr.mxu0 0.0
    %330 = vmatpush1.msra.mxu0 0.0
    %331 = vmatprep.subr.mxu0 0.0
    %332 = vmatpush1.msra.mxu0 0.0
    %333 = vmatprep.subr.mxu0 0.0
    %334 = vmatpush1.msra.mxu0 0.0
    %335 = vmatprep.subr.mxu0 0.0
    %336 = vmatpush1.msra.mxu0 0.0
    %337 = vmatprep.subr.mxu0 0.0
    %338 = vmatpush1.msra.mxu0 0.0
    %339 = vmatprep.subr.mxu0 0.0
    %340 = vmatpush1.msra.mxu0 0.0
    %341 = vmatprep.subr.mxu0 0.0
    %342 = vmatpush1.msra.mxu0 0.0
    %343 = vmatprep.subr.mxu0 0.0
    %344 = vmatpush1.msra.mxu0 0.0
    %345 = vmatprep.subr.mxu0 0.0
    %346 = vmatpush1.msra.mxu0 0.0
    %347 = vmatprep.subr.mxu0 0.0
    %348 = vmatpush1.msra.mxu0 0.0
    %349 = vmatprep.subr.mxu0 0.0
    %350 = vmatpush1.msra.mxu0 0.0
    %351 = vmatprep.subr.mxu0 0.0
    %352 = vmatpush1.msra.mxu0 0.0
    %353 = vmatprep.subr.mxu0 0.0
    %354 = vmatpush1.msra.mxu0 0.0
    %355 = vmatprep.subr.mxu0 0.0
    %356 = vmatpush1.msra.mxu0 0.0
    %357 = vmatprep.subr.mxu0 0.0
    %358 = vmatpush1.msra.mxu0 0.0
    %359 = vmatprep.subr.mxu0 0.0
    %360 = vmatpush1.msra.mxu0 0.0
    %361 = vmatprep.subr.mxu0 0.0
    %362 = vmatpush1.msra.mxu0 0.0
    %363 = vmatprep.subr.mxu0 0.0
    %364 = vmatpush1.msra.mxu0 0.0
    %365 = vmatprep.subr.mxu0 0.0
    %366 = vmatpush1.msra.mxu0 0.0
    %367 = vmatprep.subr.mxu0 0.0
    %368 = vmatpush1.msra.mxu0 0.0
    %369 = vmatprep.subr.mxu0 0.0
    %370 = vmatpush1.msra.mxu0 0.0
    %371 = vmatprep.mubr.f32.mxu0 0.0
    %372 = vmatmul.mubr.f32.gmra.mrb[0].mxu0 %v305
    %v373 = vpop.f32.mrb[0].mxu0
    %v374 = vadd.f32 %v89, %v373
    %v375 = vpop.f32.mrb[0].mxu0
    %v376 = vadd.f32 %v90, %v375
    %377 = vdwg.mxu0
    %378 = vst [vmem:[#allocation8] sm:$0xff] %v374
    %379 = vst [vmem:[#allocation8 + $0x8] sm:$0xff] %v376
    %s380 = scalar_lea.vmem [#allocation2], 16
    %v381 = vld [vmem:[%s380] sm:$0xff]
    %v382 = vld [vmem:[%s380 + $0x8] sm:$0xff]
    %383 = vrot.lane.b32.xlu0 %v381, 1
    %v384 = vpop.permute.xlu0 %383
    %385 = vrot.lane.b32.xlu0 %v382, 1
    %v386 = vpop.permute.xlu0 %385
    %v387 = vsel %vm95, %v384, %v386
    %v388 = vsel %vm95, %v386, %v384
    %v389 = vsel %vm79, %v388, 0.0
    %v390 = vsel %vm80, %v387, 0.0
    %391 = vrot.lane.b32.xlu0 %v381, 127
    %v392 = vpop.permute.xlu0 %391
    %393 = vrot.lane.b32.xlu0 %v382, 127
    %v394 = vpop.permute.xlu0 %393
    %v395 = vsel %vm104, %v392, %v394
    %v396 = vsel %vm104, %v394, %v392
    %v397 = vsel %vm81, %v395, 0.0
    %v398 = vsel %vm82, %v396, 0.0
    %399 = vrot.lane.b32.xlu0 %v389, 16
    %v400 = vpop.permute.xlu0 %399
    %401 = vrot.lane.b32.xlu0 %v390, 16
    %v402 = vpop.permute.xlu0 %401
    %v403 = vsel %vm113, %v400, %v402
    %v404 = vsel %vm113, %v402, %v400
    %v405 = vsel %vm83, %v404, 0.0
    %v406 = vsel %vm84, %v403, 0.0
    %407 = vrot.lane.b32.xlu0 %v381, 16
    %v408 = vpop.permute.xlu0 %407
    %409 = vrot.lane.b32.xlu0 %v382, 16
    %v410 = vpop.permute.xlu0 %409
    %v411 = vsel %vm113, %v408, %v410
    %v412 = vsel %vm113, %v410, %v408
    %v413 = vsel %vm83, %v412, 0.0
    %v414 = vsel %vm84, %v411, 0.0
    %415 = vrot.lane.b32.xlu0 %v397, 16
    %v416 = vpop.permute.xlu0 %415
    %417 = vrot.lane.b32.xlu0 %v398, 16
    %v418 = vpop.permute.xlu0 %417
    %v419 = vsel %vm113, %v416, %v418
    %v420 = vsel %vm113, %v418, %v416
    %v421 = vsel %vm83, %v420, 0.0
    %v422 = vsel %vm84, %v419, 0.0
    %423 = vrot.lane.b32.xlu0 %v389, 112
    %v424 = vpop.permute.xlu0 %423
    %425 = vrot.lane.b32.xlu0 %v390, 112
    %v426 = vpop.permute.xlu0 %425
    %v427 = vsel %vm138, %v424, %v426
    %v428 = vsel %vm138, %v426, %v424
    %v429 = vsel %vm85, %v427, 0.0
    %v430 = vsel %vm86, %v428, 0.0
    %431 = vrot.lane.b32.xlu0 %v381, 112
    %v432 = vpop.permute.xlu0 %431
    %433 = vrot.lane.b32.xlu0 %v382, 112
    %v434 = vpop.permute.xlu0 %433
    %v435 = vsel %vm138, %v432, %v434
    %v436 = vsel %vm138, %v434, %v432
    %v437 = vsel %vm85, %v435, 0.0
    %v438 = vsel %vm86, %v436, 0.0
    %439 = vrot.lane.b32.xlu0 %v397, 112
    %v440 = vpop.permute.xlu0 %439
    %441 = vrot.lane.b32.xlu0 %v398, 112
    %v442 = vpop.permute.xlu0 %441
    %v443 = vsel %vm138, %v440, %v442
    %v444 = vsel %vm138, %v442, %v440
    %v445 = vsel %vm85, %v443, 0.0
    %v446 = vsel %vm86, %v444, 0.0
    %447 = vmatprep.subr.mxu0 %v406
    %448 = vmatpush1.msra.mxu0 %v405
    %449 = vmatprep.subr.mxu0 %v414
    %450 = vmatpush1.msra.mxu0 %v413
    %451 = vmatprep.subr.mxu0 %v422
    %452 = vmatpush1.msra.mxu0 %v421
    %453 = vmatprep.subr.mxu0 %v390
    %454 = vmatpush1.msra.mxu0 %v389
    %455 = vmatprep.subr.mxu0 %v382
    %456 = vmatpush1.msra.mxu0 %v381
    %457 = vmatprep.subr.mxu0 %v398
    %458 = vmatpush1.msra.mxu0 %v397
    %459 = vmatprep.subr.mxu0 %v430
    %460 = vmatpush1.msra.mxu0 %v429
    %461 = vmatprep.subr.mxu0 %v438
    %462 = vmatpush1.msra.mxu0 %v437
    %463 = vmatprep.subr.mxu0 %v446
    %464 = vmatpush1.msra.mxu0 %v445
    %465 = vmatprep.subr.mxu0 %v165
    %466 = vmatpush1.msra.mxu0 %v165
    %467 = vmatprep.subr.mxu0 0.0
    %468 = vmatpush1.msra.mxu0 0.0
    %469 = vmatprep.subr.mxu0 0.0
    %470 = vmatpush1.msra.mxu0 0.0
    %471 = vmatprep.subr.mxu0 0.0
    %472 = vmatpush1.msra.mxu0 0.0
    %473 = vmatprep.subr.mxu0 0.0
    %474 = vmatpush1.msra.mxu0 0.0
    %475 = vmatprep.subr.mxu0 0.0
    %476 = vmatpush1.msra.mxu0 0.0
    %477 = vmatprep.subr.mxu0 0.0
    %478 = vmatpush1.msra.mxu0 0.0
    %479 = vmatprep.subr.mxu0 0.0
    %480 = vmatpush1.msra.mxu0 0.0
    %481 = vmatprep.subr.mxu0 0.0
    %482 = vmatpush1.msra.mxu0 0.0
    %483 = vmatprep.subr.mxu0 0.0
    %484 = vmatpush1.msra.mxu0 0.0
    %485 = vmatprep.subr.mxu0 0.0
    %486 = vmatpush1.msra.mxu0 0.0
    %487 = vmatprep.subr.mxu0 0.0
    %488 = vmatpush1.msra.mxu0 0.0
    %489 = vmatprep.subr.mxu0 0.0
    %490 = vmatpush1.msra.mxu0 0.0
    %491 = vmatprep.subr.mxu0 0.0
    %492 = vmatpush1.msra.mxu0 0.0
    %493 = vmatprep.subr.mxu0 0.0
    %494 = vmatpush1.msra.mxu0 0.0
    %495 = vmatprep.subr.mxu0 0.0
    %496 = vmatpush1.msra.mxu0 0.0
    %497 = vmatprep.subr.mxu0 0.0
    %498 = vmatpush1.msra.mxu0 0.0
    %499 = vmatprep.subr.mxu0 0.0
    %500 = vmatpush1.msra.mxu0 0.0
    %501 = vmatprep.subr.mxu0 0.0
    %502 = vmatpush1.msra.mxu0 0.0
    %503 = vmatprep.subr.mxu0 0.0
    %504 = vmatpush1.msra.mxu0 0.0
    %505 = vmatprep.subr.mxu0 0.0
    %506 = vmatpush1.msra.mxu0 0.0
    %507 = vmatprep.subr.mxu0 0.0
    %508 = vmatpush1.msra.mxu0 0.0
    %509 = vmatprep.subr.mxu0 0.0
    %510 = vmatpush1.msra.mxu0 0.0
    %511 = vmatprep.mubr.f32.mxu0 0.0
    %512 = vmatmul.mubr.f32.gmra.mrb[0].mxu0 %v161
    %v513 = vpop.f32.mrb[0].mxu0
    %v514 = vadd.f32 0.0, %v513
    %v515 = vpop.f32.mrb[0].mxu0
    %v516 = vadd.f32 0.0, %v515
    %517 = vdwg.mxu0
    %v518 = vmax.f32 %v514, 0.0
    %v519 = vmax.f32 %v516, 0.0
    %520 = vrot.lane.b32.xlu0 %v518, 1
    %v521 = vpop.permute.xlu0 %520
    %522 = vrot.lane.b32.xlu0 %v519, 1
    %v523 = vpop.permute.xlu0 %522
    %v524 = vsel %vm95, %v521, %v523
    %v525 = vsel %vm95, %v523, %v521
    %v526 = vsel %vm79, %v525, 0.0
    %v527 = vsel %vm80, %v524, 0.0
    %528 = vrot.lane.b32.xlu0 %v518, 127
    %v529 = vpop.permute.xlu0 %528
    %530 = vrot.lane.b32.xlu0 %v519, 127
    %v531 = vpop.permute.xlu0 %530
    %v532 = vsel %vm104, %v529, %v531
    %v533 = vsel %vm104, %v531, %v529
    %v534 = vsel %vm81, %v532, 0.0
    %v535 = vsel %vm82, %v533, 0.0
    %536 = vrot.lane.b32.xlu0 %v526, 16
    %v537 = vpop.permute.xlu0 %536
    %538 = vrot.lane.b32.xlu0 %v527, 16
    %v539 = vpop.permute.xlu0 %538
    %v540 = vsel %vm113, %v537, %v539
    %v541 = vsel %vm113, %v539, %v537
    %v542 = vsel %vm83, %v541, 0.0
    %v543 = vsel %vm84, %v540, 0.0
    %544 = vrot.lane.b32.xlu0 %v518, 16
    %v545 = vpop.permute.xlu0 %544
    %546 = vrot.lane.b32.xlu0 %v519, 16
    %v547 = vpop.permute.xlu0 %546
    %v548 = vsel %vm113, %v545, %v547
    %v549 = vsel %vm113, %v547, %v545
    %v550 = vsel %vm83, %v549, 0.0
    %v551 = vsel %vm84, %v548, 0.0
    %552 = vrot.lane.b32.xlu0 %v534, 16
    %v553 = vpop.permute.xlu0 %552
    %554 = vrot.lane.b32.xlu0 %v535, 16
    %v555 = vpop.permute.xlu0 %554
    %v556 = vsel %vm113, %v553, %v555
    %v557 = vsel %vm113, %v555, %v553
    %v558 = vsel %vm83, %v557, 0.0
    %v559 = vsel %vm84, %v556, 0.0
    %560 = vrot.lane.b32.xlu0 %v526, 112
    %v561 = vpop.permute.xlu0 %560
    %562 = vrot.lane.b32.xlu0 %v527, 112
    %v563 = vpop.permute.xlu0 %562
    %v564 = vsel %vm138, %v561, %v563
    %v565 = vsel %vm138, %v563, %v561
    %v566 = vsel %vm85, %v564, 0.0
    %v567 = vsel %vm86, %v565, 0.0
    %568 = vrot.lane.b32.xlu0 %v518, 112
    %v569 = vpop.permute.xlu0 %568
    %570 = vrot.lane.b32.xlu0 %v519, 112
    %v571 = vpop.permute.xlu0 %570
    %v572 = vsel %vm138, %v569, %v571
    %v573 = vsel %vm138, %v571, %v569
    %v574 = vsel %vm85, %v572, 0.0
    %v575 = vsel %vm86, %v573, 0.0
    %576 = vrot.lane.b32.xlu0 %v534, 112
    %v577 = vpop.permute.xlu0 %576
    %578 = vrot.lane.b32.xlu0 %v535, 112
    %v579 = vpop.permute.xlu0 %578
    %v580 = vsel %vm138, %v577, %v579
    %v581 = vsel %vm138, %v579, %v577
    %v582 = vsel %vm85, %v580, 0.0
    %v583 = vsel %vm86, %v581, 0.0
    %584 = vmatprep.subr.mxu0 %v543
    %585 = vmatpush1.msra.mxu0 %v542
    %586 = vmatprep.subr.mxu0 %v551
    %587 = vmatpush1.msra.mxu0 %v550
    %588 = vmatprep.subr.mxu0 %v559
    %589 = vmatpush1.msra.mxu0 %v558
    %590 = vmatprep.subr.mxu0 %v527
    %591 = vmatpush1.msra.mxu0 %v526
    %592 = vmatprep.subr.mxu0 %v519
    %593 = vmatpush1.msra.mxu0 %v518
    %594 = vmatprep.subr.mxu0 %v535
    %595 = vmatpush1.msra.mxu0 %v534
    %596 = vmatprep.subr.mxu0 %v567
    %597 = vmatpush1.msra.mxu0 %v566
    %598 = vmatprep.subr.mxu0 %v575
    %599 = vmatpush1.msra.mxu0 %v574
    %600 = vmatprep.subr.mxu0 %v583
    %601 = vmatpush1.msra.mxu0 %v582
    %602 = vmatprep.subr.mxu0 %v165
    %603 = vmatpush1.msra.mxu0 %v165
    %604 = vmatprep.subr.mxu0 0.0
    %605 = vmatpush1.msra.mxu0 0.0
    %606 = vmatprep.subr.mxu0 0.0
    %607 = vmatpush1.msra.mxu0 0.0
    %608 = vmatprep.subr.mxu0 0.0
    %609 = vmatpush1.msra.mxu0 0.0
    %610 = vmatprep.subr.mxu0 0.0
    %611 = vmatpush1.msra.mxu0 0.0
    %612 = vmatprep.subr.mxu0 0.0
    %613 = vmatpush1.msra.mxu0 0.0
    %614 = vmatprep.subr.mxu0 0.0
    %615 = vmatpush1.msra.mxu0 0.0
    %616 = vmatprep.subr.mxu0 0.0
    %617 = vmatpush1.msra.mxu0 0.0
    %618 = vmatprep.subr.mxu0 0.0
    %619 = vmatpush1.msra.mxu0 0.0
    %620 = vmatprep.subr.mxu0 0.0
    %621 = vmatpush1.msra.mxu0 0.0
    %622 = vmatprep.subr.mxu0 0.0
    %623 = vmatpush1.msra.mxu0 0.0
    %624 = vmatprep.subr.mxu0 0.0
    %625 = vmatpush1.msra.mxu0 0.0
    %626 = vmatprep.subr.mxu0 0.0
    %627 = vmatpush1.msra.mxu0 0.0
    %628 = vmatprep.subr.mxu0 0.0
    %629 = vmatpush1.msra.mxu0 0.0
    %630 = vmatprep.subr.mxu0 0.0
    %631 = vmatpush1.msra.mxu0 0.0
    %632 = vmatprep.subr.mxu0 0.0
    %633 = vmatpush1.msra.mxu0 0.0
    %634 = vmatprep.subr.mxu0 0.0
    %635 = vmatpush1.msra.mxu0 0.0
    %636 = vmatprep.subr.mxu0 0.0
    %637 = vmatpush1.msra.mxu0 0.0
    %638 = vmatprep.subr.mxu0 0.0
    %639 = vmatpush1.msra.mxu0 0.0
    %640 = vmatprep.subr.mxu0 0.0
    %641 = vmatpush1.msra.mxu0 0.0
    %642 = vmatprep.subr.mxu0 0.0
    %643 = vmatpush1.msra.mxu0 0.0
    %644 = vmatprep.subr.mxu0 0.0
    %645 = vmatpush1.msra.mxu0 0.0
    %646 = vmatprep.subr.mxu0 0.0
    %647 = vmatpush1.msra.mxu0 0.0
    %648 = vmatprep.mubr.f32.mxu0 0.0
    %649 = vmatmul.mubr.f32.gmra.mrb[0].mxu0 %v305
    %v650 = vpop.f32.mrb[0].mxu0
    %v651 = vadd.f32 %v381, %v650
    %v652 = vpop.f32.mrb[0].mxu0
    %v653 = vadd.f32 %v382, %v652
    %654 = vdwg.mxu0
    %s655 = scalar_lea.vmem [#allocation8], 16
    %656 = vst [vmem:[%s655] sm:$0xff] %v651
    %657 = vst [vmem:[%s655 + $0x8] sm:$0xff] %v653
    // Predicated region
    $region26: #{tpu_custom_call.1} parent=1 // pred_check
      _
    $region27: #{tpu_custom_call.1} parent=1 // pred_check_branch
      %659 = sbr.rel (0) target = $region29
    $region28: #{tpu_custom_call.1} parent=1 // pred_region
      %s661 = ssub.s32 512, 512
      %662 = vsyncadd [#allocation4], %s661
      %s663 = sshll.u32 [#allocation8], 4
      %s664 = int_to_ptr.vmem [resolvable:$true] %s663
      %669 = dma.vmem_to_hbm [thread:$0]  %s664, 512, %s3, [#allocation4], 256, 256, 16
    $region29: #{tpu_custom_call.1} parent=1 // pred_fallthru
      _
    // Predicated region
    $region30: #{tpu_custom_call.1} parent=1 // pred_check
      _
    $region31: #{tpu_custom_call.1} parent=1 // pred_check_branch
      %671 = sbr.rel (0) target = $region33
    $region32: #{tpu_custom_call.1} parent=1 // pred_region
      %672 = dma.done [#allocation4], 512
    $region33: #{tpu_custom_call.1} parent=1 // pred_fallthru
      _
    %673 = vsyncpa [#allocation3], 1
    %674 = vsyncpa [#allocation6], 1
    %675 = vsyncpa [#allocation4], 1

</llo_original>
